<compile_context>
chip_gen: v5e
topology: v5e:2x2
jax: 0.10.0
libtpu: 0.0.40
codegen_flags: <defaults>
</compile_context>

<pallas_src>
import functools
import math

import jax
import jax.numpy as jnp
from jax.experimental import pallas as pl
from jax.experimental.pallas import tpu as pltpu


def _mv_depth_loss_kernel(m_ref, rays_ref, curd_ref, predd_ref, src_ref,
                          sum_ref, cnt_ref, *, H, W, TN, n_real, n_pad, eps):
    """One grid point = one (batch b, source view k, output-pixel tile t)."""
    f32 = jnp.float32
    b = pl.program_id(0)
    k = pl.program_id(1)
    t = pl.program_id(2)

    # Per-(b,k) accumulators live in the (revisited) output block across t.
    @pl.when(t == 0)
    def _():
        sum_ref[...] = jnp.zeros_like(sum_ref)
        cnt_ref[...] = jnp.zeros_like(cnt_ref)

    # 12 folded-affine coefficients (K_src @ src_cam_T_world @ cur_world_T_cam)
    # read as scalars from SMEM (scalar prefetch).
    def c(i):
        return m_ref[b, k, i]

    rays = rays_ref[0].astype(f32)                     # (3, TN) invK rays
    r0 = rays[0:1, :]
    r1 = rays[1:2, :]
    r2 = rays[2:3, :]

    # Depth-independent part of the projection: R @ rays and translation.
    rr = [c(4 * i + 0) * r0 + c(4 * i + 1) * r1 + c(4 * i + 2) * r2
          for i in range(3)]                           # 3 x (1, TN)
    tt = [c(4 * i + 3) for i in range(3)]              # 3 scalars

    def project(depth_1n):
        # Project3D: perspective divide with the reference eps guard.
        x = depth_1n * rr[0] + tt[0]
        y = depth_1n * rr[1] + tt[1]
        z = depth_1n * rr[2] + tt[2]
        zd = z + eps
        scale = jnp.where(jnp.abs(z) > eps, 1.0 / zd, 1.0)
        return x * scale, y * scale, zd

    cur_d = curd_ref[0].astype(f32)                    # (1, TN) current GT depth
    pred_d = predd_ref[0].astype(f32)                  # (1, TN) predicted depth
    src_hw = src_ref[0, 0].astype(f32)                 # (H, W) source GT depth

    # --- valid-mask pass: project current GT depth, nearest-sample source map
    #     (F.grid_sample, mode='nearest', padding_mode='zeros',
    #      align_corners=False; normalise->unnormalise collapses to px - 0.5).
    px, py, proj_src = project(cur_d)
    xr = jnp.round(px - 0.5)                           # round-half-even == torch
    yr = jnp.round(py - 0.5)
    inb = ((xr >= 0.0) & (xr <= W - 1.0) &
           (yr >= 0.0) & (yr <= H - 1.0))              # (1, TN)
    xi = jnp.clip(xr, 0.0, W - 1.0).astype(jnp.int32)
    yi = jnp.clip(yr, 0.0, H - 1.0).astype(jnp.int32)

    # Separable gather: column one-hot on the MXU, row select on VPU/XLU.
    iota_w = jax.lax.broadcasted_iota(jnp.int32, (W, 1), 0)
    onehot_x = ((iota_w == xi) & inb).astype(f32)      # (W, TN), zeros padding
    rows = jnp.dot(src_hw, onehot_x,
                   preferred_element_type=f32)         # (H, TN): src[h, xi[n]]
    iota_h = jax.lax.broadcasted_iota(jnp.int32, (H, 1), 0)
    onehot_y = (iota_h == yi).astype(f32)              # (H, TN)
    sampled = jnp.sum(rows * onehot_y, axis=0, keepdims=True)   # (1, TN)

    valid = (proj_src < 1.05 * sampled) & (proj_src > 0.0) & (sampled > 0.0)

    # --- error pass: project predicted depth, log-space difference.
    _, _, pred_src = project(pred_d)
    diff = jnp.abs(jnp.log(sampled / pred_src))        # single log (EUP saving)
    include = valid & jnp.logical_not(jnp.isnan(diff))  # nanmean exclusion

    if n_pad != n_real:                                 # exclude padded lanes
        lane = jax.lax.broadcasted_iota(jnp.int32, (1, TN), 1)
        include = include & ((t * TN + lane) < n_real)

    sum_ref[...] += jnp.where(include, diff, 0.0).reshape(1, 1, 1, TN)
    cnt_ref[...] += include.astype(f32).reshape(1, 1, 1, TN)


def _round_up(x, m):
    return (x + m - 1) // m * m


def _pick_out_tile(n, H, W, budget_bytes=8 << 20):
    """Largest lane-dense output tile whose in-kernel intermediates fit budget.

    Per-step VMEM estimate (f32): onehot_x (W,TN) + rows/onehot_y (2*(H,TN))
    + ~8 (1,TN) temps, plus the double-buffered (H,W) src block.
    """
    cap = _round_up(n, 128)
    best = 128
    for t in (128, 256, 512, 1024):
        if t > cap:
            break
        est = 4 * ((W + 2 * H + 8) * t + 2 * H * W)
        if est <= budget_bytes:
            best = t
    return min(best, cap)


def mv_depth_loss_forward(depth_pred_b1hw, cur_depth_b1hw, src_depth_bk1hw,
                          cur_invK_b44, src_K_bk44, cur_world_T_cam_b44,
                          src_cam_T_world_bk44, eps=1e-8):
    """Equivalent of MVDepthLoss.forward; returns the scalar loss."""
    B, K, _, H, W = src_depth_bk1hw.shape
    N = H * W
    f32 = jnp.float32
    hi = jax.lax.Precision.HIGHEST

    TN = _pick_out_tile(N, H, W)
    N_pad = _round_up(N, TN)
    num_tiles = N_pad // TN

    # BackprojectDepth rays: invK[:3,:3] @ (x+0.5, y+0.5, 1)  -> (B, 3, N)
    xs = jnp.arange(W, dtype=f32) + 0.5
    ys = jnp.arange(H, dtype=f32) + 0.5
    xx = jnp.broadcast_to(xs[None, :], (H, W))
    yy = jnp.broadcast_to(ys[:, None], (H, W))
    pix_3N = jnp.stack([xx, yy, jnp.ones((H, W), f32)], 0).reshape(3, N)
    rays_b3N = jnp.einsum('bij,jn->bin', cur_invK_b44[:, :3, :3].astype(f32),
                          pix_3N, precision=hi)

    # Fold K_src @ src_cam_T_world @ cur_world_T_cam into one 3x4 affine per
    # (b, k); per-pixel projection happens inside the kernel.
    P_bk44 = jnp.einsum('bkij,bkjl->bkil', src_K_bk44.astype(f32),
                        src_cam_T_world_bk44.astype(f32), precision=hi)
    M_bk44 = jnp.einsum('bkij,bjl->bkil', P_bk44,
                        cur_world_T_cam_b44.astype(f32), precision=hi)
    M_bk12 = M_bk44[:, :, :3, :].reshape(B, K, 12)     # scalar-prefetched (SMEM)

    cur_d = cur_depth_b1hw.reshape(B, 1, N).astype(f32)
    pred_d = depth_pred_b1hw.reshape(B, 1, N).astype(f32)
    src_d = src_depth_bk1hw.reshape(B, K, H, W).astype(f32)  # natural 2-D layout

    if N_pad != N:  # keep outputs/blocks lane-dense; padded lanes masked in-kernel
        pad = [(0, 0), (0, 0), (0, N_pad - N)]
        rays_b3N = jnp.pad(rays_b3N, pad)
        cur_d = jnp.pad(cur_d, pad)
        pred_d = jnp.pad(pred_d, pad)

    kernel = functools.partial(_mv_depth_loss_kernel, H=H, W=W, TN=TN,
                               n_real=N, n_pad=N_pad, eps=eps)
    sums, cnts = pl.pallas_call(
        kernel,
        out_shape=(jax.ShapeDtypeStruct((B, K, 1, TN), f32),
                   jax.ShapeDtypeStruct((B, K, 1, TN), f32)),
        grid_spec=pltpu.PrefetchScalarGridSpec(
            num_scalar_prefetch=1,
            grid=(B, K, num_tiles),
            in_specs=[
                pl.BlockSpec((1, 3, TN), lambda b, k, t, m: (b, 0, t)),
                pl.BlockSpec((1, 1, TN), lambda b, k, t, m: (b, 0, t)),
                pl.BlockSpec((1, 1, TN), lambda b, k, t, m: (b, 0, t)),
                pl.BlockSpec((1, 1, H, W), lambda b, k, t, m: (b, k, 0, 0)),
            ],
            out_specs=(
                pl.BlockSpec((1, 1, 1, TN), lambda b, k, t, m: (b, k, 0, 0)),
                pl.BlockSpec((1, 1, 1, TN), lambda b, k, t, m: (b, k, 0, 0)),
            ),
        ),
        compiler_params=pltpu.CompilerParams(
            dimension_semantics=("parallel", "parallel", "arbitrary"),
            vmem_limit_bytes=48 * 1024 * 1024),
    )(M_bk12, rays_b3N, cur_d, pred_d, src_d)

    # Per-view nanmean (pooled over batch + pixels), then average over the K
    # source views — matches the torch module; an empty/all-NaN selection
    # yields NaN via 0/0 exactly like nanmean.
    sum_k = jnp.sum(sums, axis=(0, 2, 3))
    cnt_k = jnp.sum(cnts, axis=(0, 2, 3))
    return jnp.sum(sum_k / cnt_k) / K


def _mv_depth_loss_reference(depth_pred, cur_depth, src_depth_bk, cur_invK,
                             src_K_bk, cur_world_T_cam, src_cam_T_world_bk,
                             eps=1e-8):
    """Pure-JAX reference mirroring the torch module op-for-op."""
    B, K, _, H, W = src_depth_bk.shape
    N = H * W
    f32 = jnp.float32
    hi = jax.lax.Precision.HIGHEST

    xs = jnp.arange(W, dtype=f32) + 0.5
    ys = jnp.arange(H, dtype=f32) + 0.5
    xx = jnp.broadcast_to(xs[None, :], (H, W))
    yy = jnp.broadcast_to(ys[:, None], (H, W))
    pix = jnp.stack([xx, yy, jnp.ones((H, W), f32)], 0).reshape(3, N)
    ones_1N = jnp.ones((B, 1, N), f32)

    def project(depth_b1N, P_b34):
        rays = jnp.einsum('bij,jn->bin', cur_invK[:, :3, :3], pix, precision=hi)
        cam = depth_b1N * rays
        cam4 = jnp.concatenate([cam, ones_1N], axis=1)
        world = jnp.einsum('bij,bjn->bin', cur_world_T_cam, cam4, precision=hi)
        sc = jnp.einsum('bij,bjn->bin', P_b34, world, precision=hi)
        z = sc[:, 2:3]
        zd = z + eps
        scale = jnp.where(jnp.abs(z) > eps, 1.0 / zd, 1.0)
        return sc[:, 0:1] * scale, sc[:, 1:2] * scale, zd

    loss = 0.0
    for k in range(K):
        P = jnp.einsum('bij,bjl->bil', src_K_bk[:, k], src_cam_T_world_bk[:, k],
                       precision=hi)[:, :3]
        cur_flat = cur_depth.reshape(B, 1, N)
        pred_flat = depth_pred.reshape(B, 1, N)
        src_flat = src_depth_bk[:, k].reshape(B, N)

        px, py, proj_src = project(cur_flat, P)
        xr = jnp.round(px - 0.5)
        yr = jnp.round(py - 0.5)
        inb = (xr >= 0) & (xr <= W - 1) & (yr >= 0) & (yr <= H - 1)
        xi = jnp.clip(xr, 0, W - 1).astype(jnp.int32)
        yi = jnp.clip(yr, 0, H - 1).astype(jnp.int32)
        idx = (yi * W + xi)[:, 0]
        sampled = jnp.take_along_axis(src_flat, idx, axis=1)[:, None, :]
        sampled = jnp.where(inb, sampled, 0.0)

        valid = (proj_src < 1.05 * sampled) & (proj_src > 0) & (sampled > 0)
        _, _, pred_src = project(pred_flat, P)
        diff = jnp.abs(jnp.log(sampled) - jnp.log(pred_src))
        incl = valid & jnp.logical_not(jnp.isnan(diff))
        loss = loss + (jnp.sum(jnp.where(incl, diff, 0.0)) /
                       jnp.sum(incl.astype(f32)))
    return loss / K


def _make_cameras(B, K, H, W):
    """Deterministic intrinsics / extrinsics."""
    f32 = jnp.float32
    fx, fy = float(W), float(H)
    cx, cy = W / 2.0, H / 2.0
    Kmat = jnp.array([[fx, 0.0, cx, 0.0],
                      [0.0, fy, cy, 0.0],
                      [0.0, 0.0, 1.0, 0.0],
                      [0.0, 0.0, 0.0, 1.0]], dtype=f32)
    invK = jnp.array([[1.0 / fx, 0.0, -cx / fx, 0.0],
                      [0.0, 1.0 / fy, -cy / fy, 0.0],
                      [0.0, 0.0, 1.0, 0.0],
                      [0.0, 0.0, 0.0, 1.0]], dtype=f32)
    cur_invK = jnp.broadcast_to(invK, (B, 4, 4))
    src_Ks = jnp.broadcast_to(Kmat, (B, K, 4, 4))
    cur_world_T_cam = jnp.broadcast_to(jnp.eye(4, dtype=f32), (B, 4, 4))

    extrs = []
    for b in range(B):
        row = []
        for k in range(K):
            th = 0.03 * (k + 1) + 0.01 * b
            c, s = math.cos(th), math.sin(th)
            E = jnp.array([[c, 0.0, s, 0.08 * (k + 1) + 0.02 * b],
                           [0.0, 1.0, 0.0, 0.03],
                           [-s, 0.0, c, 0.05 * k],
                           [0.0, 0.0, 0.0, 1.0]], dtype=f32)
            row.append(E)
        extrs.append(jnp.stack(row, 0))
    src_cam_T_world = jnp.stack(extrs, 0)
    return cur_invK, src_Ks, cur_world_T_cam, src_cam_T_world


if __name__ == "__main__":
    B, K, H, W = 2, 2, 16, 16

    key = jax.random.PRNGKey(0)
    k1, k2, k3 = jax.random.split(key, 3)
    cur_depth = jax.random.uniform(k1, (B, 1, H, W), jnp.float32, 1.0, 2.0)
    depth_pred = cur_depth * (
        1.0 + 0.05 * jax.random.normal(k2, (B, 1, H, W), jnp.float32))
    src_depth = jax.random.uniform(k3, (B, K, 1, H, W), jnp.float32, 2.0, 4.0)

    cur_invK, src_Ks, cur_world_T_cam, src_cam_T_world = _make_cameras(B, K, H, W)

    loss = mv_depth_loss_forward(depth_pred, cur_depth, src_depth, cur_invK,
                                 src_Ks, cur_world_T_cam, src_cam_T_world)
    loss = jax.block_until_ready(loss)

    ref = _mv_depth_loss_reference(depth_pred, cur_depth, src_depth, cur_invK,
                                   src_Ks, cur_world_T_cam, src_cam_T_world)
    ref = jax.block_until_ready(ref)

    assert loss.shape == ()
    assert bool(jnp.isfinite(loss)), loss
    assert bool(jnp.abs(loss - ref) <= 1e-2 * jnp.maximum(jnp.abs(ref), 1.0)), \
        (loss, ref)
    print("KERNEL_OK")
</pallas_src>

<mosaic_0001>
module attributes {stable_mosaic.version = 11 : i64} {
  func.func @_mv_depth_loss_kernel(%arg0: i32, %arg1: i32, %arg2: i32, %arg3: memref<2x2x12xf32, #tpu.memory_space<smem>>, %arg4: memref<1x3x256xf32, #tpu.memory_space<vmem>>, %arg5: memref<1x1x256xf32, #tpu.memory_space<vmem>>, %arg6: memref<1x1x256xf32, #tpu.memory_space<vmem>>, %arg7: memref<1x1x16x16xf32, #tpu.memory_space<vmem>>, %arg8: memref<1x1x1x256xf32, #tpu.memory_space<vmem>>, %arg9: memref<1x1x1x256xf32, #tpu.memory_space<vmem>>) attributes {dimension_semantics = [#tpu.dimension_semantics<parallel>, #tpu.dimension_semantics<parallel>, #tpu.dimension_semantics<arbitrary>], iteration_bounds = array<i64: 2, 2, 1>, scalar_prefetch = 1 : i64, scratch_operands = 0 : i64, tpu.core_type = #tpu.core_type<tc>, window_params = [{transform_indices = @transform_0, window_bounds = array<i64: 1, 3, 256>}, {transform_indices = @transform_1, window_bounds = array<i64: 1, 1, 256>}, {transform_indices = @transform_2, window_bounds = array<i64: 1, 1, 256>}, {transform_indices = @transform_3, window_bounds = array<i64: 1, 1, 16, 16>}, {transform_indices = @transform_4, window_bounds = array<i64: 1, 1, 1, 256>}, {transform_indices = @transform_5, window_bounds = array<i64: 1, 1, 1, 256>}]} {
    %c0_i32 = arith.constant 0 : i32
    %0 = arith.cmpi eq, %arg2, %c0_i32 : i32
    %1 = arith.extui %0 : i1 to i32
    %c0_i32_0 = arith.constant 0 : i32
    %2 = arith.cmpi ne, %1, %c0_i32_0 : i32
    scf.if %2 {
      %cst_51 = arith.constant 0.000000e+00 : f32
      %171 = vector.broadcast %cst_51 : f32 to vector<1x1x1x256xf32>
      %c0_52 = arith.constant 0 : index
      %c0_53 = arith.constant 0 : index
      %c0_54 = arith.constant 0 : index
      %c0_55 = arith.constant 0 : index
      %172 = vector.load %arg8[%c0_52, %c0_53, %c0_54, %c0_55] : memref<1x1x1x256xf32, #tpu.memory_space<vmem>>, vector<1x1x1x256xf32>
      tpu.vector_store %arg8[%c0_52, %c0_53, %c0_54, %c0_55], %171 {strides = array<i32>} : memref<1x1x1x256xf32, #tpu.memory_space<vmem>>, vector<1x1x1x256xf32>,
      %cst_56 = arith.constant 0.000000e+00 : f32
      %173 = vector.broadcast %cst_56 : f32 to vector<1x1x1x256xf32>
      %c0_57 = arith.constant 0 : index
      %c0_58 = arith.constant 0 : index
      %c0_59 = arith.constant 0 : index
      %c0_60 = arith.constant 0 : index
      %174 = vector.load %arg9[%c0_57, %c0_58, %c0_59, %c0_60] : memref<1x1x1x256xf32, #tpu.memory_space<vmem>>, vector<1x1x1x256xf32>
      tpu.vector_store %arg9[%c0_57, %c0_58, %c0_59, %c0_60], %173 {strides = array<i32>} : memref<1x1x1x256xf32, #tpu.memory_space<vmem>>, vector<1x1x1x256xf32>,
    } else {
    }
    %c0 = arith.constant 0 : index
    %c0_1 = arith.constant 0 : index
    %c0_2 = arith.constant 0 : index
    %3 = vector.load %arg4[%c0, %c0_1, %c0_2] : memref<1x3x256xf32, #tpu.memory_space<vmem>>, vector<1x3x256xf32>
    %4 = vector.shape_cast %3 : vector<1x3x256xf32> to vector<3x256xf32>
    %5 = vector.extract_strided_slice %4 {offsets = [0, 0], sizes = [1, 256], strides = [1, 1]} : vector<3x256xf32> to vector<1x256xf32>
    %6 = vector.extract_strided_slice %4 {offsets = [1, 0], sizes = [1, 256], strides = [1, 1]} : vector<3x256xf32> to vector<1x256xf32>
    %7 = vector.extract_strided_slice %4 {offsets = [2, 0], sizes = [1, 256], strides = [1, 1]} : vector<3x256xf32> to vector<1x256xf32>
    %8 = arith.index_cast %arg0 : i32 to index
    %9 = arith.index_cast %arg1 : i32 to index
    %c0_3 = arith.constant 0 : index
    %10 = memref.load %arg3[%8, %9, %c0_3] : memref<2x2x12xf32, #tpu.memory_space<smem>>
    %11 = vector.broadcast %10 : f32 to vector<1x256xf32>
    %12 = arith.mulf %11, %5 : vector<1x256xf32>
    %13 = arith.index_cast %arg0 : i32 to index
    %14 = arith.index_cast %arg1 : i32 to index
    %c1 = arith.constant 1 : index
    %15 = memref.load %arg3[%13, %14, %c1] : memref<2x2x12xf32, #tpu.memory_space<smem>>
    %16 = vector.broadcast %15 : f32 to vector<1x256xf32>
    %17 = arith.mulf %16, %6 : vector<1x256xf32>
    %18 = arith.addf %12, %17 : vector<1x256xf32>
    %19 = arith.index_cast %arg0 : i32 to index
    %20 = arith.index_cast %arg1 : i32 to index
    %c2 = arith.constant 2 : index
    %21 = memref.load %arg3[%19, %20, %c2] : memref<2x2x12xf32, #tpu.memory_space<smem>>
    %22 = vector.broadcast %21 : f32 to vector<1x256xf32>
    %23 = arith.mulf %22, %7 : vector<1x256xf32>
    %24 = arith.addf %18, %23 : vector<1x256xf32>
    %25 = arith.index_cast %arg0 : i32 to index
    %26 = arith.index_cast %arg1 : i32 to index
    %c4 = arith.constant 4 : index
    %27 = memref.load %arg3[%25, %26, %c4] : memref<2x2x12xf32, #tpu.memory_space<smem>>
    %28 = vector.broadcast %27 : f32 to vector<1x256xf32>
    %29 = arith.mulf %28, %5 : vector<1x256xf32>
    %30 = arith.index_cast %arg0 : i32 to index
    %31 = arith.index_cast %arg1 : i32 to index
    %c5 = arith.constant 5 : index
    %32 = memref.load %arg3[%30, %31, %c5] : memref<2x2x12xf32, #tpu.memory_space<smem>>
    %33 = vector.broadcast %32 : f32 to vector<1x256xf32>
    %34 = arith.mulf %33, %6 : vector<1x256xf32>
    %35 = arith.addf %29, %34 : vector<1x256xf32>
    %36 = arith.index_cast %arg0 : i32 to index
    %37 = arith.index_cast %arg1 : i32 to index
    %c6 = arith.constant 6 : index
    %38 = memref.load %arg3[%36, %37, %c6] : memref<2x2x12xf32, #tpu.memory_space<smem>>
    %39 = vector.broadcast %38 : f32 to vector<1x256xf32>
    %40 = arith.mulf %39, %7 : vector<1x256xf32>
    %41 = arith.addf %35, %40 : vector<1x256xf32>
    %42 = arith.index_cast %arg0 : i32 to index
    %43 = arith.index_cast %arg1 : i32 to index
    %c8 = arith.constant 8 : index
    %44 = memref.load %arg3[%42, %43, %c8] : memref<2x2x12xf32, #tpu.memory_space<smem>>
    %45 = vector.broadcast %44 : f32 to vector<1x256xf32>
    %46 = arith.mulf %45, %5 : vector<1x256xf32>
    %47 = arith.index_cast %arg0 : i32 to index
    %48 = arith.index_cast %arg1 : i32 to index
    %c9 = arith.constant 9 : index
    %49 = memref.load %arg3[%47, %48, %c9] : memref<2x2x12xf32, #tpu.memory_space<smem>>
    %50 = vector.broadcast %49 : f32 to vector<1x256xf32>
    %51 = arith.mulf %50, %6 : vector<1x256xf32>
    %52 = arith.addf %46, %51 : vector<1x256xf32>
    %53 = arith.index_cast %arg0 : i32 to index
    %54 = arith.index_cast %arg1 : i32 to index
    %c10 = arith.constant 10 : index
    %55 = memref.load %arg3[%53, %54, %c10] : memref<2x2x12xf32, #tpu.memory_space<smem>>
    %56 = vector.broadcast %55 : f32 to vector<1x256xf32>
    %57 = arith.mulf %56, %7 : vector<1x256xf32>
    %58 = arith.addf %52, %57 : vector<1x256xf32>
    %59 = arith.index_cast %arg0 : i32 to index
    %60 = arith.index_cast %arg1 : i32 to index
    %c3 = arith.constant 3 : index
    %61 = memref.load %arg3[%59, %60, %c3] : memref<2x2x12xf32, #tpu.memory_space<smem>>
    %62 = arith.index_cast %arg0 : i32 to index
    %63 = arith.index_cast %arg1 : i32 to index
    %c7 = arith.constant 7 : index
    %64 = memref.load %arg3[%62, %63, %c7] : memref<2x2x12xf32, #tpu.memory_space<smem>>
    %65 = arith.index_cast %arg0 : i32 to index
    %66 = arith.index_cast %arg1 : i32 to index
    %c11 = arith.constant 11 : index
    %67 = memref.load %arg3[%65, %66, %c11] : memref<2x2x12xf32, #tpu.memory_space<smem>>
    %c0_4 = arith.constant 0 : index
    %c0_5 = arith.constant 0 : index
    %c0_6 = arith.constant 0 : index
    %68 = vector.load %arg5[%c0_4, %c0_5, %c0_6] : memref<1x1x256xf32, #tpu.memory_space<vmem>>, vector<1x1x256xf32>
    %69 = vector.shape_cast %68 : vector<1x1x256xf32> to vector<1x256xf32>
    %c0_7 = arith.constant 0 : index
    %c0_8 = arith.constant 0 : index
    %c0_9 = arith.constant 0 : index
    %70 = vector.load %arg6[%c0_7, %c0_8, %c0_9] : memref<1x1x256xf32, #tpu.memory_space<vmem>>, vector<1x1x256xf32>
    %71 = vector.shape_cast %70 : vector<1x1x256xf32> to vector<1x256xf32>
    %c0_10 = arith.constant 0 : index
    %c0_11 = arith.constant 0 : index
    %c0_12 = arith.constant 0 : index
    %c0_13 = arith.constant 0 : index
    %72 = vector.load %arg7[%c0_10, %c0_11, %c0_12, %c0_13] : memref<1x1x16x16xf32, #tpu.memory_space<vmem>>, vector<1x1x16x16xf32>
    %73 = vector.shape_cast %72 : vector<1x1x16x16xf32> to vector<16x16xf32>
    %74 = arith.mulf %69, %24 : vector<1x256xf32>
    %75 = vector.broadcast %61 : f32 to vector<1x256xf32>
    %76 = arith.addf %74, %75 : vector<1x256xf32>
    %77 = arith.mulf %69, %41 : vector<1x256xf32>
    %78 = vector.broadcast %64 : f32 to vector<1x256xf32>
    %79 = arith.addf %77, %78 : vector<1x256xf32>
    %80 = arith.mulf %69, %58 : vector<1x256xf32>
    %81 = vector.broadcast %67 : f32 to vector<1x256xf32>
    %82 = arith.addf %80, %81 : vector<1x256xf32>
    %cst = arith.constant 9.99999993E-9 : f32
    %83 = vector.broadcast %cst : f32 to vector<1x256xf32>
    %84 = arith.addf %82, %83 : vector<1x256xf32>
    %85 = math.absf %82 : vector<1x256xf32>
    %cst_14 = arith.constant 9.99999993E-9 : f32
    %86 = vector.broadcast %cst_14 : f32 to vector<1x256xf32>
    %87 = arith.cmpf ogt, %85, %86 : vector<1x256xf32>
    %cst_15 = arith.constant 1.000000e+00 : f32
    %88 = vector.broadcast %cst_15 : f32 to vector<1x256xf32>
    %89 = arith.divf %88, %84 : vector<1x256xf32>
    %cst_16 = arith.constant 1.000000e+00 : f32
    %90 = vector.broadcast %cst_16 : f32 to vector<1x256xf32>
    %91 = arith.select %87, %89, %90 : vector<1x256xi1>, vector<1x256xf32>
    %92 = arith.mulf %76, %91 : vector<1x256xf32>
    %93 = arith.mulf %79, %91 : vector<1x256xf32>
    %cst_17 = arith.constant 5.000000e-01 : f32
    %94 = vector.broadcast %cst_17 : f32 to vector<1x256xf32>
    %95 = arith.subf %92, %94 : vector<1x256xf32>
    %96 = math.roundeven %95 : vector<1x256xf32>
    %cst_18 = arith.constant 5.000000e-01 : f32
    %97 = vector.broadcast %cst_18 : f32 to vector<1x256xf32>
    %98 = arith.subf %93, %97 : vector<1x256xf32>
    %99 = math.roundeven %98 : vector<1x256xf32>
    %cst_19 = arith.constant 0.000000e+00 : f32
    %100 = vector.broadcast %cst_19 : f32 to vector<1x256xf32>
    %101 = arith.cmpf oge, %96, %100 : vector<1x256xf32>
    %cst_20 = arith.constant 1.500000e+01 : f32
    %102 = vector.broadcast %cst_20 : f32 to vector<1x256xf32>
    %103 = arith.cmpf ole, %96, %102 : vector<1x256xf32>
    %104 = arith.andi %101, %103 : vector<1x256xi1>
    %cst_21 = arith.constant 0.000000e+00 : f32
    %105 = vector.broadcast %cst_21 : f32 to vector<1x256xf32>
    %106 = arith.cmpf oge, %99, %105 : vector<1x256xf32>
    %107 = arith.andi %104, %106 : vector<1x256xi1>
    %cst_22 = arith.constant 1.500000e+01 : f32
    %108 = vector.broadcast %cst_22 : f32 to vector<1x256xf32>
    %109 = arith.cmpf ole, %99, %108 : vector<1x256xf32>
    %110 = arith.andi %107, %109 : vector<1x256xi1>
    %cst_23 = arith.constant 0.000000e+00 : f32
    %cst_24 = arith.constant 1.500000e+01 : f32
    %111 = vector.broadcast %cst_23 : f32 to vector<1x256xf32>
    %112 = arith.maximumf %111, %96 : vector<1x256xf32>
    %113 = vector.broadcast %cst_24 : f32 to vector<1x256xf32>
    %114 = arith.minimumf %113, %112 : vector<1x256xf32>
    %115 = arith.fptosi %114 : vector<1x256xf32> to vector<1x256xi32>
    %cst_25 = arith.constant 0.000000e+00 : f32
    %cst_26 = arith.constant 1.500000e+01 : f32
    %116 = vector.broadcast %cst_25 : f32 to vector<1x256xf32>
    %117 = arith.maximumf %116, %99 : vector<1x256xf32>
    %118 = vector.broadcast %cst_26 : f32 to vector<1x256xf32>
    %119 = arith.minimumf %118, %117 : vector<1x256xf32>
    %120 = arith.fptosi %119 : vector<1x256xf32> to vector<1x256xi32>
    %121 = tpu.iota {dimensions = array<i32: 0>} : vector<16x1xi32>
    %122 = vector.broadcast %121 : vector<16x1xi32> to vector<16x256xi32>
    %123 = vector.broadcast %115 : vector<1x256xi32> to vector<16x256xi32>
    %124 = arith.cmpi eq, %122, %123 : vector<16x256xi32>
    %125 = vector.broadcast %110 : vector<1x256xi1> to vector<16x256xi1>
    %126 = arith.andi %124, %125 : vector<16x256xi1>
    %127 = arith.extui %126 : vector<16x256xi1> to vector<16x256xi32>
    %128 = arith.sitofp %127 : vector<16x256xi32> to vector<16x256xf32>
    %cst_27 = arith.constant dense<0.000000e+00> : vector<16x256xf32>
    %129 = tpu.matmul %73, %128, %cst_27 {dimension_numbers = #tpu.dot_dimension_numbers<[1], [0], [0], [1], [0, 0, 1, 1], [], []>} : vector<16x16xf32>, vector<16x256xf32>, vector<16x256xf32> -> vector<16x256xf32>
    %130 = tpu.iota {dimensions = array<i32: 0>} : vector<16x1xi32>
    %131 = vector.broadcast %130 : vector<16x1xi32> to vector<16x256xi32>
    %132 = vector.broadcast %120 : vector<1x256xi32> to vector<16x256xi32>
    %133 = arith.cmpi eq, %131, %132 : vector<16x256xi32>
    %134 = arith.extui %133 : vector<16x256xi1> to vector<16x256xi32>
    %135 = arith.sitofp %134 : vector<16x256xi32> to vector<16x256xf32>
    %136 = arith.mulf %129, %135 : vector<16x256xf32>
    %cst_28 = arith.constant dense<0.000000e+00> : vector<256xf32>
    %137 = vector.multi_reduction <add>, %136, %cst_28 [0] : vector<16x256xf32> to vector<256xf32>
    %138 = vector.shape_cast %137 : vector<256xf32> to vector<1x256xf32>
    %cst_29 = arith.constant 1.050000e+00 : f32
    %139 = vector.broadcast %cst_29 : f32 to vector<1x256xf32>
    %140 = arith.mulf %139, %138 : vector<1x256xf32>
    %141 = arith.cmpf olt, %84, %140 : vector<1x256xf32>
    %cst_30 = arith.constant 0.000000e+00 : f32
    %142 = vector.broadcast %cst_30 : f32 to vector<1x256xf32>
    %143 = arith.cmpf ogt, %84, %142 : vector<1x256xf32>
    %144 = arith.andi %141, %143 : vector<1x256xi1>
    %cst_31 = arith.constant 0.000000e+00 : f32
    %145 = vector.broadcast %cst_31 : f32 to vector<1x256xf32>
    %146 = arith.cmpf ogt, %138, %145 : vector<1x256xf32>
    %147 = arith.andi %144, %146 : vector<1x256xi1>
    %148 = arith.mulf %71, %58 : vector<1x256xf32>
    %149 = vector.broadcast %67 : f32 to vector<1x256xf32>
    %150 = arith.addf %148, %149 : vector<1x256xf32>
    %cst_32 = arith.constant 9.99999993E-9 : f32
    %151 = vector.broadcast %cst_32 : f32 to vector<1x256xf32>
    %152 = arith.addf %150, %151 : vector<1x256xf32>
    %153 = arith.divf %138, %152 : vector<1x256xf32>
    %154 = math.log %153 : vector<1x256xf32>
    %155 = math.absf %154 : vector<1x256xf32>
    %156 = arith.cmpf one, %155, %155 : vector<1x256xf32>
    %cst_33 = arith.constant dense<true> : vector<1x256xi1>
    %157 = arith.xori %156, %cst_33 : vector<1x256xi1>
    %158 = arith.andi %147, %157 : vector<1x256xi1>
    %c0_34 = arith.constant 0 : index
    %c0_35 = arith.constant 0 : index
    %c0_36 = arith.constant 0 : index
    %c0_37 = arith.constant 0 : index
    %159 = vector.load %arg8[%c0_34, %c0_35, %c0_36, %c0_37] : memref<1x1x1x256xf32, #tpu.memory_space<vmem>>, vector<1x1x1x256xf32>
    %cst_38 = arith.constant 0.000000e+00 : f32
    %160 = vector.broadcast %cst_38 : f32 to vector<1x256xf32>
    %161 = arith.select %158, %155, %160 : vector<1x256xi1>, vector<1x256xf32>
    %162 = vector.shape_cast %161 : vector<1x256xf32> to vector<1x1x1x256xf32>
    %163 = arith.addf %159, %162 : vector<1x1x1x256xf32>
    %c0_39 = arith.constant 0 : index
    %c0_40 = arith.constant 0 : index
    %c0_41 = arith.constant 0 : index
    %c0_42 = arith.constant 0 : index
    %164 = vector.load %arg8[%c0_39, %c0_40, %c0_41, %c0_42] : memref<1x1x1x256xf32, #tpu.memory_space<vmem>>, vector<1x1x1x256xf32>
    tpu.vector_store %arg8[%c0_39, %c0_40, %c0_41, %c0_42], %163 {strides = array<i32>} : memref<1x1x1x256xf32, #tpu.memory_space<vmem>>, vector<1x1x1x256xf32>,
    %c0_43 = arith.constant 0 : index
    %c0_44 = arith.constant 0 : index
    %c0_45 = arith.constant 0 : index
    %c0_46 = arith.constant 0 : index
    %165 = vector.load %arg9[%c0_43, %c0_44, %c0_45, %c0_46] : memref<1x1x1x256xf32, #tpu.memory_space<vmem>>, vector<1x1x1x256xf32>
    %166 = arith.extui %158 : vector<1x256xi1> to vector<1x256xi32>
    %167 = arith.sitofp %166 : vector<1x256xi32> to vector<1x256xf32>
    %168 = vector.shape_cast %167 : vector<1x256xf32> to vector<1x1x1x256xf32>
    %169 = arith.addf %165, %168 : vector<1x1x1x256xf32>
    %c0_47 = arith.constant 0 : index
    %c0_48 = arith.constant 0 : index
    %c0_49 = arith.constant 0 : index
    %c0_50 = arith.constant 0 : index
    %170 = vector.load %arg9[%c0_47, %c0_48, %c0_49, %c0_50] : memref<1x1x1x256xf32, #tpu.memory_space<vmem>>, vector<1x1x1x256xf32>
    tpu.vector_store %arg9[%c0_47, %c0_48, %c0_49, %c0_50], %169 {strides = array<i32>} : memref<1x1x1x256xf32, #tpu.memory_space<vmem>>, vector<1x1x1x256xf32>,
    return
  }
  func.func @transform_0(%arg0: i32, %arg1: i32, %arg2: i32, %arg3: memref<2x2x12xf32, #tpu.memory_space<smem>>) -> (i32, i32, i32) {
    %c0_i32 = arith.constant 0 : i32
    %c0_i32_0 = arith.constant 0 : i32
    return %arg0, %c0_i32, %arg2 : i32, i32, i32
  }
  func.func @transform_1(%arg0: i32, %arg1: i32, %arg2: i32, %arg3: memref<2x2x12xf32, #tpu.memory_space<smem>>) -> (i32, i32, i32) {
    %c0_i32 = arith.constant 0 : i32
    %c0_i32_0 = arith.constant 0 : i32
    return %arg0, %c0_i32, %arg2 : i32, i32, i32
  }
  func.func @transform_2(%arg0: i32, %arg1: i32, %arg2: i32, %arg3: memref<2x2x12xf32, #tpu.memory_space<smem>>) -> (i32, i32, i32) {
    %c0_i32 = arith.constant 0 : i32
    %c0_i32_0 = arith.constant 0 : i32
    return %arg0, %c0_i32, %arg2 : i32, i32, i32
  }
  func.func @transform_3(%arg0: i32, %arg1: i32, %arg2: i32, %arg3: memref<2x2x12xf32, #tpu.memory_space<smem>>) -> (i32, i32, i32, i32) {
    %c0_i32 = arith.constant 0 : i32
    %c0_i32_0 = arith.constant 0 : i32
    %c0_i32_1 = arith.constant 0 : i32
    return %arg0, %arg1, %c0_i32, %c0_i32_0 : i32, i32, i32, i32
  }
  func.func @transform_4(%arg0: i32, %arg1: i32, %arg2: i32, %arg3: memref<2x2x12xf32, #tpu.memory_space<smem>>) -> (i32, i32, i32, i32) {
    %c0_i32 = arith.constant 0 : i32
    %c0_i32_0 = arith.constant 0 : i32
    %c0_i32_1 = arith.constant 0 : i32
    return %arg0, %arg1, %c0_i32, %c0_i32_0 : i32, i32, i32, i32
  }
  func.func @transform_5(%arg0: i32, %arg1: i32, %arg2: i32, %arg3: memref<2x2x12xf32, #tpu.memory_space<smem>>) -> (i32, i32, i32, i32) {
    %c0_i32 = arith.constant 0 : i32
    %c0_i32_0 = arith.constant 0 : i32
    %c0_i32_1 = arith.constant 0 : i32
    return %arg0, %arg1, %c0_i32, %c0_i32_0 : i32, i32, i32, i32
  }
}

</mosaic_0001>

<llo_original>
// kernel: tpu_custom_call.1
$region0: #{tpu_custom_call.1}
  #allocation0 [shape = 'u32[]', space=smem, size = 0x4, offset = 0x4, fixed_abs, tag = 'smem constant byte address 0x4 - core index']
  #allocation1 [shape = 'u32[72,128]{1,0:T(1,128)}', space=vmem, size = 0x9000, scoped, tag = 'internal scratch']
  #allocation2 [shape = 's32[1]{0}', space=sflag, size = 0x4, scoped, tag = 'scoped memory for tpu_custom_call.1']
  #allocation3 [shape = 'u8[2048]{0}', space=smem, size = 0x800, scoped, tag = 'prefetched SMEM operand 0']
  %s0 = inlined_call_operand.vmem [shape: f32[2,2,12], index: 0, kind: input, shape index: {}]
  %s1 = inlined_call_operand.vmem [shape: f32[2,3,256], index: 1, kind: input, shape index: {}]
  %s2 = inlined_call_operand.vmem [shape: f32[2,1,256], index: 2, kind: input, shape index: {}]
  %s3 = inlined_call_operand.vmem [shape: f32[2,1,256], index: 3, kind: input, shape index: {}]
  %s4 = inlined_call_operand.hbm [shape: f32[2,2,16,16], index: 4, kind: input, shape index: {}]
  %s5 = inlined_call_operand.hbm [shape: f32[2,2,1,256], index: 5, kind: output, shape index: {0}]
  %s6 = inlined_call_operand.hbm [shape: f32[2,2,1,256], index: 6, kind: output, shape index: {1}]
  %7 = xla_tuple %s5, %s6
  %s8 = sld [smem:[#allocation0]]
  $region65: #{tpu_custom_call.1} parent=0
    _
  %s10 = ssub.s32 1, %s8
  %s11 = scalar_select 0, %s10, %s8
  %s13 = sshll.u32 %s0, 4
  %s14 = int_to_ptr.vmem [resolvable:$true] %s13
  %16 = dma.vmem_to_smem %s14, 64, [#allocation3], [#allocation2]
  %18 = dma.done [#allocation2], 64
  %19 = sfence
  $region1: #{tpu_custom_call.1} parent=0
    #allocation4 [shape = 'u8[16384]{0}', space=vmem, size = 0x4000, scoped, tag = 'input window, operand 4']
    #allocation5 [shape = 's32[2]{0}', space=sflag, size = 0x8, scoped, tag = 'scoped memory for tpu_custom_call.1']
    #allocation6 [shape = 's32[2]{0}', space=sflag, size = 0x8, scoped, tag = 'scoped memory for tpu_custom_call.1']
    #allocation7 [shape = 'u8[2048]{0}', space=vmem, size = 0x800, scoped, tag = 'output window, operand 0']
    #allocation8 [shape = 'u8[2048]{0}', space=vmem, size = 0x800, scoped, tag = 'output window, operand 1']
    #allocation9 [shape = 's32[2]{0}', space=sflag, size = 0x8, scoped, tag = 'scoped memory for tpu_custom_call.1']
    %20 = vsyncpa [#allocation5], 0
    %s21 = scalar_lea.sflag [#allocation5], 1
    %22 = vsyncpa %s21, 0
    %23 = vsyncpa [#allocation6], 0
    %s24 = scalar_lea.sflag [#allocation6], 1
    %25 = vsyncpa %s24, 0
    %26 = vsyncpa [#allocation9], 0
    %s27 = scalar_lea.sflag [#allocation9], 1
    %28 = vsyncpa %s27, 0
    loop: start=0, step=1, limit=6
    $region2: #{tpu_custom_call.1} parent=1 // loop_pre_header
      _
    $region3: #{tpu_custom_call.1} parent=1 // loop_header
      %s30 = sphi 0, %s34
      %p31 = scmp.ge.s32.totalorder %s30, 6
      %s37 = sphi 0, %s56
      %s38 = sphi 0, %s52
      %s39 = sphi 0, %s48
      %s40 = sphi 0, %s37
      %s41 = sphi 0, %s38
      %s42 = sphi 0, %s39
      %s43 = sphi 0, %s40
      %s44 = sphi 0, %s41
      %s45 = sphi 0, %s42
      %s61 = sphi 0, %s63
      %s64 = sphi 0, %s61
      %s65 = sphi 0, %s64
      %s81 = sphi 0, %s65
      %s89 = sphi 0, %s91
      %s92 = sphi 0, %s89
      %s93 = sphi 0, %s92
      %s109 = sphi 0, %s93
      %s117 = sphi 0, %s119
      %s120 = sphi 0, %s117
      %s121 = sphi 0, %s120
      %s137 = sphi 0, %s121
      %s145 = sphi 0, %s147
      %s148 = sphi 0, %s145
      %s149 = sphi 0, %s148
      %s165 = sphi 0, %s149
      %s173 = sphi 0, %s175
      %s176 = sphi 0, %s173
      %s177 = sphi 0, %s176
      %s193 = sphi 0, %s177
      %s201 = sphi 0, %s203
      %s204 = sphi 0, %s201
      %s205 = sphi 0, %s204
      %s221 = sphi 0, %s205
    $region4: #{tpu_custom_call.1} parent=1 // loop_header_branch
      %33 = sbr.rel (%p31) target = $region8
    $region5: #{tpu_custom_call.1} parent=1 // loop_body
      %s35 = ssub.s32 %s30, 1
      %s36 = ssub.s32 %s30, 2
      %s46 = sadd.s32 1, %s39
      %p47 = scmp.ge.s32.totalorder %s46, 1
      %s48 = scalar_select %p47, 0, %s46
      %s49 = sadd.s32 1, %s38
      %s50 = scalar_select %p47, %s49, %s38
      %p51 = scmp.ge.s32.totalorder %s50, 2
      %s52 = scalar_select %p51, 0, %s50
      %s53 = sadd.s32 1, %s37
      %s54 = scalar_select %p51, %s53, %s37
      %p55 = scmp.ge.s32.totalorder %s54, 2
      %s56 = scalar_select %p55, 0, %s54
      %s57 = ssub.s32 %s37, %s56
      %s58 = ssub.s32 %s39, %s48
      %s59 = sor.u32 %s57, %s58
      %p60 = scmp.eq.s32.totalorder %s59, 0
      %s62 = sadd.s32 %s61, 1
      %s63 = scalar_select %p60, %s61, %s62
      %p66 = pneg %p60
      %p67 = scmp.eq.s32.totalorder %s30, 3
      %p68 = por %p66, %p67
      %p69 = scmp.ne.s32.totalorder %s61, %s64
      %p70 = scmp.eq.s32.totalorder %s30, 0
      %p71 = por %p69, %p70
      %p72 = scmp.ne.s32.totalorder %s61, %s64
      %p73 = scmp.eq.s32.totalorder %s35, 3
      %p74 = por %p72, %p73
      %p75 = scmp.ne.s32.totalorder %s64, %s65
      %p76 = scmp.eq.s32.totalorder %s35, 0
      %p77 = por %p75, %p76
      %p78 = scmp.ne.s32.totalorder %s64, %s65
      %p79 = scmp.eq.s32.totalorder %s36, 3
      %p80 = por %p78, %p79
      %p82 = scmp.ne.s32.totalorder %s65, %s81
      %p83 = scmp.eq.s32.totalorder %s36, 0
      %p84 = por %p82, %p83
      %s85 = ssub.s32 %s37, %s56
      %s86 = ssub.s32 %s39, %s48
      %s87 = sor.u32 %s85, %s86
      %p88 = scmp.eq.s32.totalorder %s87, 0
      %s90 = sadd.s32 %s89, 1
      %s91 = scalar_select %p88, %s89, %s90
      %p94 = pneg %p88
      %p95 = scmp.eq.s32.totalorder %s30, 3
      %p96 = por %p94, %p95
      %p97 = scmp.ne.s32.totalorder %s89, %s92
      %p98 = scmp.eq.s32.totalorder %s30, 0
      %p99 = por %p97, %p98
      %p100 = scmp.ne.s32.totalorder %s89, %s92
      %p101 = scmp.eq.s32.totalorder %s35, 3
      %p102 = por %p100, %p101
      %p103 = scmp.ne.s32.totalorder %s92, %s93
      %p104 = scmp.eq.s32.totalorder %s35, 0
      %p105 = por %p103, %p104
      %p106 = scmp.ne.s32.totalorder %s92, %s93
      %p107 = scmp.eq.s32.totalorder %s36, 3
      %p108 = por %p106, %p107
      %p110 = scmp.ne.s32.totalorder %s93, %s109
      %p111 = scmp.eq.s32.totalorder %s36, 0
      %p112 = por %p110, %p111
      %s113 = ssub.s32 %s37, %s56
      %s114 = ssub.s32 %s39, %s48
      %s115 = sor.u32 %s113, %s114
      %p116 = scmp.eq.s32.totalorder %s115, 0
      %s118 = sadd.s32 %s117, 1
      %s119 = scalar_select %p116, %s117, %s118
      %p122 = pneg %p116
      %p123 = scmp.eq.s32.totalorder %s30, 3
      %p124 = por %p122, %p123
      %p125 = scmp.ne.s32.totalorder %s117, %s120
      %p126 = scmp.eq.s32.totalorder %s30, 0
      %p127 = por %p125, %p126
      %p128 = scmp.ne.s32.totalorder %s117, %s120
      %p129 = scmp.eq.s32.totalorder %s35, 3
      %p130 = por %p128, %p129
      %p131 = scmp.ne.s32.totalorder %s120, %s121
      %p132 = scmp.eq.s32.totalorder %s35, 0
      %p133 = por %p131, %p132
      %p134 = scmp.ne.s32.totalorder %s120, %s121
      %p135 = scmp.eq.s32.totalorder %s36, 3
      %p136 = por %p134, %p135
      %p138 = scmp.ne.s32.totalorder %s121, %s137
      %p139 = scmp.eq.s32.totalorder %s36, 0
      %p140 = por %p138, %p139
      %s141 = ssub.s32 %s37, %s56
      %s142 = ssub.s32 %s38, %s52
      %s143 = sor.u32 %s141, %s142
      %p144 = scmp.eq.s32.totalorder %s143, 0
      %s146 = sadd.s32 %s145, 1
      %s147 = scalar_select %p144, %s145, %s146
      %p150 = pneg %p144
      %p151 = scmp.eq.s32.totalorder %s30, 3
      %p152 = por %p150, %p151
      %p153 = scmp.ne.s32.totalorder %s145, %s148
      %p154 = scmp.eq.s32.totalorder %s30, 0
      %p155 = por %p153, %p154
      %p156 = scmp.ne.s32.totalorder %s145, %s148
      %p157 = scmp.eq.s32.totalorder %s35, 3
      %p158 = por %p156, %p157
      %p159 = scmp.ne.s32.totalorder %s148, %s149
      %p160 = scmp.eq.s32.totalorder %s35, 0
      %p161 = por %p159, %p160
      %p162 = scmp.ne.s32.totalorder %s148, %s149
      %p163 = scmp.eq.s32.totalorder %s36, 3
      %p164 = por %p162, %p163
      %p166 = scmp.ne.s32.totalorder %s149, %s165
      %p167 = scmp.eq.s32.totalorder %s36, 0
      %p168 = por %p166, %p167
      %s169 = ssub.s32 %s37, %s56
      %s170 = ssub.s32 %s38, %s52
      %s171 = sor.u32 %s169, %s170
      %p172 = scmp.eq.s32.totalorder %s171, 0
      %s174 = sadd.s32 %s173, 1
      %s175 = scalar_select %p172, %s173, %s174
      %p178 = pneg %p172
      %p179 = scmp.eq.s32.totalorder %s30, 3
      %p180 = por %p178, %p179
      %p181 = scmp.ne.s32.totalorder %s173, %s176
      %p182 = scmp.eq.s32.totalorder %s30, 0
      %p183 = por %p181, %p182
      %p184 = scmp.ne.s32.totalorder %s173, %s176
      %p185 = scmp.eq.s32.totalorder %s35, 3
      %p186 = por %p184, %p185
      %p187 = scmp.ne.s32.totalorder %s176, %s177
      %p188 = scmp.eq.s32.totalorder %s35, 0
      %p189 = por %p187, %p188
      %p190 = scmp.ne.s32.totalorder %s176, %s177
      %p191 = scmp.eq.s32.totalorder %s36, 3
      %p192 = por %p190, %p191
      %p194 = scmp.ne.s32.totalorder %s177, %s193
      %p195 = scmp.eq.s32.totalorder %s36, 0
      %p196 = por %p194, %p195
      %s197 = ssub.s32 %s37, %s56
      %s198 = ssub.s32 %s38, %s52
      %s199 = sor.u32 %s197, %s198
      %p200 = scmp.eq.s32.totalorder %s199, 0
      %s202 = sadd.s32 %s201, 1
      %s203 = scalar_select %p200, %s201, %s202
      %p206 = pneg %p200
      %p207 = scmp.eq.s32.totalorder %s30, 3
      %p208 = por %p206, %p207
      %p209 = scmp.ne.s32.totalorder %s201, %s204
      %p210 = scmp.eq.s32.totalorder %s30, 0
      %p211 = por %p209, %p210
      %p212 = scmp.ne.s32.totalorder %s201, %s204
      %p213 = scmp.eq.s32.totalorder %s35, 3
      %p214 = por %p212, %p213
      %p215 = scmp.ne.s32.totalorder %s204, %s205
      %p216 = scmp.eq.s32.totalorder %s35, 0
      %p217 = por %p215, %p216
      %p218 = scmp.ne.s32.totalorder %s204, %s205
      %p219 = scmp.eq.s32.totalorder %s36, 3
      %p220 = por %p218, %p219
      %p222 = scmp.ne.s32.totalorder %s205, %s221
      %p223 = scmp.eq.s32.totalorder %s36, 0
      %p224 = por %p222, %p223
      %p225 = scmp.le.s32.totalorder 1, %s30
      %p226 = scmp.lt.s32.totalorder %s30, 5
      %p227 = pnand %p225, %p226
      %p228 = pneg %p227
      // Predicated region
      $region9: #{tpu_custom_call.1} parent=5 // pred_check
        _
      $region10: #{tpu_custom_call.1} parent=5 // pred_check_branch
        %230 = sbr.rel (%p227) target = $region12
      $region11: #{tpu_custom_call.1} parent=5 // pred_region
        %s231 = ssub.s32 %s30, 1
      $region12: #{tpu_custom_call.1} parent=5 // pred_fallthru
        _
      %p232 = scmp.lt.s32.totalorder %s30, 4
      // Predicated region
      $region13: #{tpu_custom_call.1} parent=5 // pred_check
        %p233 = pneg %p232
      $region14: #{tpu_custom_call.1} parent=5 // pred_check_branch
        %235 = sbr.rel (%p233) target = $region16
      $region15: #{tpu_custom_call.1} parent=5 // pred_region
        // Predicated region
        $region17: #{tpu_custom_call.1} parent=15 // pred_check
          %p236 = pneg %p71
        $region18: #{tpu_custom_call.1} parent=15 // pred_check_branch
          %238 = sbr.rel (%p236) target = $region20
        $region19: #{tpu_custom_call.1} parent=15 // pred_region
          %s239 = smul.u32 2, %s39
          %p240 = scmp.lt.s32.totalorder %s37, 1
          %s241 = scalar_select %p240, %s37, 1
          %p242 = scmp.lt.s32.totalorder %s239, 1
          %s243 = scalar_select %p242, %s239, 1
          %s244 = smul.addr %s241, 2
          %s245 = sadd.s32 %s243, %s244
          %s246 = smul.addr %s245, 4
          %s247 = scalar_lea.vmem %s1, %s246
          %s248 = smul.u32 2, %s39
        $region20: #{tpu_custom_call.1} parent=15 // pred_fallthru
          _
        // Predicated region
        $region21: #{tpu_custom_call.1} parent=15 // pred_check
          %p249 = pneg %p99
        $region22: #{tpu_custom_call.1} parent=15 // pred_check_branch
          %251 = sbr.rel (%p249) target = $region24
        $region23: #{tpu_custom_call.1} parent=15 // pred_region
          %s252 = smul.u32 2, %s39
          %p253 = scmp.lt.s32.totalorder %s37, 1
          %s254 = scalar_select %p253, %s37, 1
          %p255 = scmp.lt.s32.totalorder %s252, 1
          %s256 = scalar_select %p255, %s252, 1
          %s257 = smul.addr %s254, 2
          %s258 = sadd.s32 %s256, %s257
          %s259 = scalar_lea.vmem %s2, %s258
          %s260 = smul.u32 2, %s39
        $region24: #{tpu_custom_call.1} parent=15 // pred_fallthru
          _
        // Predicated region
        $region25: #{tpu_custom_call.1} parent=15 // pred_check
          %p261 = pneg %p127
        $region26: #{tpu_custom_call.1} parent=15 // pred_check_branch
          %263 = sbr.rel (%p261) target = $region28
        $region27: #{tpu_custom_call.1} parent=15 // pred_region
          %s264 = smul.u32 2, %s39
          %p265 = scmp.lt.s32.totalorder %s37, 1
          %s266 = scalar_select %p265, %s37, 1
          %p267 = scmp.lt.s32.totalorder %s264, 1
          %s268 = scalar_select %p267, %s264, 1
          %s269 = smul.addr %s266, 2
          %s270 = sadd.s32 %s268, %s269
          %s271 = scalar_lea.vmem %s3, %s270
          %s272 = smul.u32 2, %s39
        $region28: #{tpu_custom_call.1} parent=15 // pred_fallthru
          _
        // Predicated region
        $region29: #{tpu_custom_call.1} parent=15 // pred_check
          %p273 = pneg %p155
        $region30: #{tpu_custom_call.1} parent=15 // pred_check_branch
          %275 = sbr.rel (%p273) target = $region32
        $region31: #{tpu_custom_call.1} parent=15 // pred_region
          %s276 = sand.u32 %s145, 1
          %s277 = scalar_lea.sflag [#allocation5], %s276
          %s278 = sand.u32 %s145, 1
          %s279 = smul.addr %s278, 16
          %s280 = scalar_lea.vmem [#allocation4], %s279
          %282 = vsyncadd %s277, 0
          %s283 = smul.addr %s38, 2
          %s284 = smul.addr %s37, 4
          %s285 = sadd.s32 %s283, %s284
          %s286 = smul.addr %s285, 8
          %s287 = scalar_lea.hbm %s4, %s286
          %s288 = sshll.u32 %s287, 4
          %s289 = int_to_ptr.hbm [resolvable:$true] %s288
          %s290 = sshll.u32 %s280, 4
          %s291 = int_to_ptr.vmem [resolvable:$true] %s290
          %296 = dma.hbm_to_vmem [thread:$0]  %s289, 256, %s291, %s277, 128, 128, 8
        $region32: #{tpu_custom_call.1} parent=15 // pred_fallthru
          _
      $region16: #{tpu_custom_call.1} parent=5 // pred_fallthru
        _
      %p297 = scmp.le.s32.totalorder 1, %s30
      %p298 = scmp.lt.s32.totalorder %s30, 5
      %p299 = pnand %p297, %p298
      %p300 = pneg %p299
      // Predicated region
      $region33: #{tpu_custom_call.1} parent=5 // pred_check
        _
      $region34: #{tpu_custom_call.1} parent=5 // pred_check_branch
        %302 = sbr.rel (%p299) target = $region36
      $region35: #{tpu_custom_call.1} parent=5 // pred_region
        %s303 = ssub.s32 %s30, 1
        %s304 = sand.u32 %s148, 1
        %s305 = scalar_lea.sflag [#allocation5], %s304
        %s306 = sand.u32 %s148, 1
        %s307 = smul.addr %s306, 16
        %s308 = scalar_lea.vmem [#allocation4], %s307
        // Predicated region
        $region37: #{tpu_custom_call.1} parent=35 // pred_check
          %p309 = pneg %p161
        $region38: #{tpu_custom_call.1} parent=35 // pred_check_branch
          %311 = sbr.rel (%p309) target = $region40
        $region39: #{tpu_custom_call.1} parent=35 // pred_region
          %313 = dma.done %s305, 256
        $region40: #{tpu_custom_call.1} parent=35 // pred_fallthru
          _
        %s314 = smul.u32 2, %s42
        %p315 = scmp.lt.s32.totalorder %s40, 1
        %s316 = scalar_select %p315, %s40, 1
        %p317 = scmp.lt.s32.totalorder %s314, 1
        %s318 = scalar_select %p317, %s314, 1
        %s319 = smul.addr %s316, 2
        %s320 = sadd.s32 %s318, %s319
        %s321 = smul.addr %s320, 4
        %s322 = scalar_lea.vmem %s1, %s321
        %p323 = pneg %p77
        %p324 = pneg %p74
        %s325 = smul.u32 2, %s42
        %p326 = scmp.lt.s32.totalorder %s40, 1
        %s327 = scalar_select %p326, %s40, 1
        %p328 = scmp.lt.s32.totalorder %s325, 1
        %s329 = scalar_select %p328, %s325, 1
        %s330 = smul.addr %s327, 2
        %s331 = sadd.s32 %s329, %s330
        %s332 = scalar_lea.vmem %s2, %s331
        %p333 = pneg %p105
        %p334 = pneg %p102
        %s335 = smul.u32 2, %s42
        %p336 = scmp.lt.s32.totalorder %s40, 1
        %s337 = scalar_select %p336, %s40, 1
        %p338 = scmp.lt.s32.totalorder %s335, 1
        %s339 = scalar_select %p338, %s335, 1
        %s340 = smul.addr %s337, 2
        %s341 = sadd.s32 %s339, %s340
        %s342 = scalar_lea.vmem %s3, %s341
        %p343 = pneg %p133
        %p344 = pneg %p130
        %s345 = sand.u32 %s148, 1
        %s346 = scalar_lea.sflag [#allocation5], %s345
        %s347 = sand.u32 %s148, 1
        %s348 = smul.addr %s347, 16
        %s349 = scalar_lea.vmem [#allocation4], %s348
        %p350 = pneg %p161
        %p351 = pneg %p158
        %p352 = pneg %p189
        %p353 = pneg %p186
        %s354 = sand.u32 %s176, 1
        %s355 = scalar_lea.sflag [#allocation6], %s354
        %s356 = sand.u32 %s176, 1
        %s357 = smul.addr %s356, 2
        %s358 = scalar_lea.vmem [#allocation7], %s357
        %p359 = pneg %p217
        %p360 = pneg %p214
        %s361 = sand.u32 %s204, 1
        %s362 = scalar_lea.sflag [#allocation9], %s361
        %s363 = sand.u32 %s204, 1
        %s364 = smul.addr %s363, 2
        %s365 = scalar_lea.vmem [#allocation8], %s364
        %s366 = smul.u32 2, %s42
        %p367 = scmp.lt.s32.totalorder %s40, 1
        %s368 = scalar_select %p367, %s40, 1
        %p369 = scmp.lt.s32.totalorder %s366, 1
        %s370 = scalar_select %p369, %s366, 1
        %s371 = smul.addr %s368, 2
        %s372 = sadd.s32 %s370, %s371
        %s373 = smul.addr %s372, 4
        %s374 = scalar_lea.vmem %s1, %s373
        %s375 = smul.u32 2, %s42
        %s376 = smul.u32 2, %s42
        %p377 = scmp.lt.s32.totalorder %s40, 1
        %s378 = scalar_select %p377, %s40, 1
        %p379 = scmp.lt.s32.totalorder %s376, 1
        %s380 = scalar_select %p379, %s376, 1
        %s381 = smul.addr %s378, 2
        %s382 = sadd.s32 %s380, %s381
        %s383 = scalar_lea.vmem %s2, %s382
        %s384 = smul.u32 2, %s42
        %s385 = smul.u32 2, %s42
        %p386 = scmp.lt.s32.totalorder %s40, 1
        %s387 = scalar_select %p386, %s40, 1
        %p388 = scmp.lt.s32.totalorder %s385, 1
        %s389 = scalar_select %p388, %s385, 1
        %s390 = smul.addr %s387, 2
        %s391 = sadd.s32 %s389, %s390
        %s392 = scalar_lea.vmem %s3, %s391
        %s393 = smul.u32 2, %s42
        %p394 = scmp.eq.s32.totalorder %s42, 0
        // Predicated region
        $region41: #{tpu_custom_call.1} parent=35 // pred_check
          %p395 = pneg %p394
        $region42: #{tpu_custom_call.1} parent=35 // pred_check_branch
          %397 = sbr.rel (%p395) target = $region44
        $region43: #{tpu_custom_call.1} parent=35 // pred_region
          %v398 = vlaneseq
          %vm399 = vcmp.ge.s32.totalorder %v398, 0
          %vm400 = vcmp.lt.s32.totalorder %v398, 256
          %vm401 = vmand %vm399, %vm400
          %402 = vst.msk [vmem:[%s358] sm:$0x3] %vm401, 0.0
          %403 = vst.msk [vmem:[%s365] sm:$0x3] %vm401, 0.0
        $region44: #{tpu_custom_call.1} parent=35 // pred_fallthru
          _
        %v404 = vld [vmem:[%s374] sm:$0x77]
        %s405 = smul.u32 %s40, 2
        %s406 = sadd.s32 %s41, %s405
        %s407 = smul.u32 %s406, 128
        %s408 = sld [smem:[#allocation3 + %s407]]
        %v409 = vstv %s408
        %v410 = vmul.f32 %v409, %v404
        %s411 = sadd.s32 %s407, 1
        %s412 = sld [smem:[#allocation3 + %s411]]
        %v413 = vstv %s412
        %v414 = vmul.f32 %v413, %v404
        %v416 = vrot.slane %v414, 5
        %v417 = vrot.slane %v416, 4
        %v419 = vadd.f32 %v410, %v417
        %s420 = sadd.s32 %s407, 2
        %s421 = sld [smem:[#allocation3 + %s420]]
        %v422 = vstv %s421
        %v423 = vmul.f32 %v422, %v404
        %v425 = vrot.slane %v423, 6
        %v426 = vrot.slane %v425, 4
        %v428 = vadd.f32 %v419, %v426
        %s429 = sadd.s32 %s407, 4
        %s430 = sld [smem:[#allocation3 + %s429]]
        %v431 = vstv %s430
        %v432 = vmul.f32 %v431, %v404
        %s433 = sadd.s32 %s407, 5
        %s434 = sld [smem:[#allocation3 + %s433]]
        %v435 = vstv %s434
        %v436 = vmul.f32 %v435, %v404
        %v438 = vrot.slane %v436, 5
        %v439 = vrot.slane %v438, 4
        %v441 = vadd.f32 %v432, %v439
        %s442 = sadd.s32 %s407, 6
        %s443 = sld [smem:[#allocation3 + %s442]]
        %v444 = vstv %s443
        %v445 = vmul.f32 %v444, %v404
        %v447 = vrot.slane %v445, 6
        %v448 = vrot.slane %v447, 4
        %v450 = vadd.f32 %v441, %v448
        %s451 = sadd.s32 %s407, 8
        %s452 = sld [smem:[#allocation3 + %s451]]
        %v453 = vstv %s452
        %v454 = vmul.f32 %v453, %v404
        %s455 = sadd.s32 %s407, 9
        %s456 = sld [smem:[#allocation3 + %s455]]
        %v457 = vstv %s456
        %v458 = vmul.f32 %v457, %v404
        %v460 = vrot.slane %v458, 5
        %v461 = vrot.slane %v460, 4
        %v463 = vadd.f32 %v454, %v461
        %s464 = sadd.s32 %s407, 10
        %s465 = sld [smem:[#allocation3 + %s464]]
        %v466 = vstv %s465
        %v467 = vmul.f32 %v466, %v404
        %v469 = vrot.slane %v467, 6
        %v470 = vrot.slane %v469, 4
        %v472 = vadd.f32 %v463, %v470
        %s473 = sadd.s32 %s407, 3
        %s474 = sld [smem:[#allocation3 + %s473]]
        %s475 = sadd.s32 %s407, 7
        %s476 = sld [smem:[#allocation3 + %s475]]
        %s477 = sadd.s32 %s407, 11
        %s478 = sld [smem:[#allocation3 + %s477]]
        %v479 = vld [vmem:[%s383] sm:$0x3]
        %v480 = vld [vmem:[%s392] sm:$0x3]
        %v481 = vld [vmem:[%s308] sm:$0xff]
        %v482 = vld [vmem:[%s308 + $0x8] sm:$0xff]
        %v484 = vrot.slane %v428, 3
        %vm485 = vcmask 1040384
        %v486 = vsel %vm485, %v428, %v484
        %v488 = vmul.f32 %v479, %v486
        %v489 = vstv %s474
        %v490 = vadd.f32 %v488, %v489
        %v492 = vrot.slane %v450, 3
        %v493 = vsel %vm485, %v450, %v492
        %v495 = vmul.f32 %v479, %v493
        %v496 = vstv %s476
        %v497 = vadd.f32 %v495, %v496
        %v499 = vrot.slane %v472, 3
        %v500 = vsel %vm485, %v472, %v499
        %v502 = vmul.f32 %v479, %v500
        %v503 = vstv %s478
        %v504 = vadd.f32 %v502, %v503
        %v505 = vadd.f32 %v504, 1e-08
        %v506 = vand.u32 2147483647, %v504
        %vm507 = vcmp.gt.f32.partialorder %v506, 1e-08
        %v508 = vrcp.pop %v505
        %v509 = vmul.f32 %v505, %v508
        %v510 = vsub.f32 1.0, %v509
        %v511 = vmul.f32 %v508, %v510
        %v512 = vadd.f32 %v508, %v511
        %vm513 = vweird.f32 %v505
        %vm514 = vweird.f32 %v508
        %vm515 = vmor %vm513, %vm514
        %v516 = vsel %vm515, %v508, %v512
        %v517 = vand.u32 2147483647, %v505
        %vm518 = vcmp.eq.f32.partialorder %v517, 8.507059e+37
        %v519 = vand.u32 %v505, 2147483648
        %v520 = vor.u32 1.1754944e-38, %v519
        %v521 = vsel %vm518, %v520, %v516
        %v522 = vmul.f32 1.0, %v521
        %v523 = vsel %vm507, %v522, 1.0
        %v524 = vmul.f32 %v490, %v523
        %v525 = vmul.f32 %v497, %v523
        %v526 = vsub.f32 %v524, 0.5
        %v527 = vround.ne.pseudo %v526
        %v528 = vsub.f32 %v525, 0.5
        %v529 = vround.ne.pseudo %v528
        %vm530 = vcmp.ge.f32.partialorder %v527, 0.0
        %vm531 = vcmp.le.f32.partialorder %v527, 15.0
        %vm532 = vmand %vm530, %vm531
        %vm533 = vcmp.ge.f32.partialorder %v529, 0.0
        %vm534 = vmand %vm532, %vm533
        %vm535 = vcmp.le.f32.partialorder %v529, 15.0
        %vm536 = vmand %vm534, %vm535
        %v537 = vmax.f32 %v527, 0.0
        %v538 = vmin.f32 %v537, 15.0
        %v539 = vcvt.f32.s32.to.zero.pseudo %v538
        %v540 = vmax.f32 %v529, 0.0
        %v541 = vmin.f32 %v540, 15.0
        %v542 = vcvt.f32.s32.to.zero.pseudo %v541
        %v543 = vlaneseq
        %v544 = vshrl.u32 %v543, 7
        %v545 = vadd.s32 %v544, 8
        %v546 = vperm.slane %v539, 0
        %v547 = vperm.slane %v539, 1
        %vm548 = vcmp.eq.s32.totalorder %v544, %v546
        %vm549 = vcmp.eq.s32.totalorder %v544, %v547
        %vm550 = vcmp.eq.s32.totalorder %v545, %v546
        %vm551 = vcmp.eq.s32.totalorder %v545, %v547
        %v552 = vsel %vm536, 1, 0
        %v553 = vperm.slane %v552, 0
        %v554 = vperm.slane %v552, 1
        %vm555 = vcmp.eq.s32.totalorder %v553, 1
        %vm556 = vcmp.eq.s32.totalorder %v554, 1
        %vm557 = vmand %vm548, %vm555
        %vm558 = vmand %vm549, %vm556
        %vm559 = vmand %vm550, %vm555
        %vm560 = vmand %vm551, %vm556
        %v561 = vsel %vm557, 1, 0
        %v562 = vsel %vm558, 1, 0
        %v563 = vsel %vm559, 1, 0
        %v564 = vsel %vm560, 1, 0
        %v565 = vcvt.s32.f32 %v561
        %v566 = vcvt.s32.f32 %v562
        %v567 = vcvt.s32.f32 %v563
        %v568 = vcvt.s32.f32 %v564
        %vm569 = vcmask 130048
        %v571 = vsel %vm569, %v481, 0
        %v574 = vsel %vm569, %v482, 0
        %576 = vmatpush.msra.mxu0 0.0
        %577 = vmatpush.msra.mxu0 0.0
        %578 = vmatpush.msra.mxu0 0.0
        %579 = vmatpush.msra.mxu0 0.0
        %580 = vmatpush.msra.mxu0 0.0
        %581 = vmatpush.msra.mxu0 0.0
        %582 = vmatpush.msra.mxu0 0.0
        %583 = vmatpush.msra.mxu0 0.0
        %584 = vmatpush.msra.mxu0 0.0
        %585 = vmatpush.msra.mxu0 0.0
        %586 = vmatpush.msra.mxu0 0.0
        %587 = vmatpush.msra.mxu0 0.0
        %588 = vmatpush.msra.mxu0 0.0
        %589 = vmatpush.msra.mxu0 0.0
        %590 = vmatpush.msra.mxu0 %v567
        %591 = vmatpush.msra.mxu0 %v565
        %592 = vmatmul.f32.gmra.mxu0 %v571
        %v593 = vpop.f32.mrf.mxu0
        %v594 = vadd.f32 0.0, %v593
        %595 = vmatmul.f32.gmra.mxu0 %v574
        %v596 = vpop.f32.mrf.mxu0
        %v597 = vadd.f32 0.0, %v596
        %598 = vdwg.mxu0
        %599 = vmatpush.msra.mxu0 0.0
        %600 = vmatpush.msra.mxu0 0.0
        %601 = vmatpush.msra.mxu0 0.0
        %602 = vmatpush.msra.mxu0 0.0
        %603 = vmatpush.msra.mxu0 0.0
        %604 = vmatpush.msra.mxu0 0.0
        %605 = vmatpush.msra.mxu0 0.0
        %606 = vmatpush.msra.mxu0 0.0
        %607 = vmatpush.msra.mxu0 0.0
        %608 = vmatpush.msra.mxu0 0.0
        %609 = vmatpush.msra.mxu0 0.0
        %610 = vmatpush.msra.mxu0 0.0
        %611 = vmatpush.msra.mxu0 0.0
        %612 = vmatpush.msra.mxu0 0.0
        %613 = vmatpush.msra.mxu0 %v568
        %614 = vmatpush.msra.mxu0 %v566
        %615 = vmatmul.f32.gmra.mxu0 %v571
        %v616 = vpop.f32.mrf.mxu0
        %v617 = vadd.f32 0.0, %v616
        %618 = vmatmul.f32.gmra.mxu0 %v574
        %v619 = vpop.f32.mrf.mxu0
        %v620 = vadd.f32 0.0, %v619
        %621 = vdwg.mxu0
        %v622 = vperm.slane %v542, 0
        %v623 = vperm.slane %v542, 1
        %vm624 = vcmp.eq.s32.totalorder %v544, %v622
        %vm625 = vcmp.eq.s32.totalorder %v544, %v623
        %vm626 = vcmp.eq.s32.totalorder %v545, %v622
        %vm627 = vcmp.eq.s32.totalorder %v545, %v623
        %v628 = vsel %vm624, 1, 0
        %v629 = vsel %vm625, 1, 0
        %v630 = vsel %vm626, 1, 0
        %v631 = vsel %vm627, 1, 0
        %v632 = vcvt.s32.f32 %v628
        %v633 = vcvt.s32.f32 %v629
        %v634 = vcvt.s32.f32 %v630
        %v635 = vcvt.s32.f32 %v631
        %v636 = vmul.f32 %v594, %v632
        %v637 = vmul.f32 %v617, %v633
        %v638 = vmul.f32 %v597, %v634
        %v639 = vmul.f32 %v620, %v635
        %v640 = vadd.f32 %v636, %v638
        %v641 = vrot.slane %v640, 4
        %v642 = vadd.f32 %v640, %v641
        %v643 = vrot.slane %v642, 2
        %v644 = vadd.f32 %v642, %v643
        %v645 = vrot.slane %v644, 1
        %v646 = vadd.f32 %v644, %v645
        %v647 = vadd.f32 %v637, %v639
        %v648 = vrot.slane %v647, 4
        %v649 = vadd.f32 %v647, %v648
        %v650 = vrot.slane %v649, 2
        %v651 = vadd.f32 %v649, %v650
        %v652 = vrot.slane %v651, 1
        %v653 = vadd.f32 %v651, %v652
        %v654 = vmul.f32 %v646, 1.05
        %v655 = vmul.f32 %v653, 1.05
        %v658 = vrot.slane %v655, 7
        %v659 = vsel %vm485, %v654, %v658
        %vm661 = vcmp.lt.f32.partialorder %v505, %v659
        %vm662 = vcmp.gt.f32.partialorder %v505, 0.0
        %vm663 = vmand %vm661, %vm662
        %vm664 = vcmp.gt.f32.partialorder %v646, 0.0
        %vm665 = vcmp.gt.f32.partialorder %v653, 0.0
        %v666 = vsel %vm664, 1, 0
        %v667 = vsel %vm665, 1, 0
        %v668 = vrot.slane %v667, 7
        %v669 = vsel %vm485, %v666, %v668
        %vm670 = vcmp.ne.s32.totalorder %v669, 0
        %vm671 = vmand %vm663, %vm670
        %v672 = vmul.f32 %v480, %v500
        %v673 = vadd.f32 %v672, %v503
        %v674 = vadd.f32 %v673, 1e-08
        %v676 = vperm.slane %v674, 0
        %v677 = vperm.slane %v674, 1
        %v680 = vrcp.pop %v676
        %v681 = vmul.f32 %v676, %v680
        %v682 = vsub.f32 1.0, %v681
        %v683 = vmul.f32 %v680, %v682
        %v684 = vadd.f32 %v680, %v683
        %vm685 = vweird.f32 %v676
        %vm686 = vweird.f32 %v680
        %vm687 = vmor %vm685, %vm686
        %v688 = vsel %vm687, %v680, %v684
        %v689 = vand.u32 2147483647, %v676
        %vm690 = vcmp.eq.f32.partialorder %v689, 8.507059e+37
        %v691 = vand.u32 %v676, 2147483648
        %v692 = vor.u32 1.1754944e-38, %v691
        %v693 = vsel %vm690, %v692, %v688
        %v694 = vmul.f32 %v646, %v693
        %v695 = vrcp.pop %v677
        %v696 = vmul.f32 %v677, %v695
        %v697 = vsub.f32 1.0, %v696
        %v698 = vmul.f32 %v695, %v697
        %v699 = vadd.f32 %v695, %v698
        %vm700 = vweird.f32 %v677
        %vm701 = vweird.f32 %v695
        %vm702 = vmor %vm700, %vm701
        %v703 = vsel %vm702, %v695, %v699
        %v704 = vand.u32 2147483647, %v677
        %vm705 = vcmp.eq.f32.partialorder %v704, 8.507059e+37
        %v706 = vand.u32 %v677, 2147483648
        %v707 = vor.u32 1.1754944e-38, %v706
        %v708 = vsel %vm705, %v707, %v703
        %v709 = vmul.f32 %v653, %v708
        %v710 = vlog2.pop %v694
        %v711 = vmul.f32 %v710, 0.6931472
        %v712 = vlog2.pop %v709
        %v713 = vmul.f32 %v712, 0.6931472
        %v714 = vand.u32 2147483647, %v711
        %v715 = vand.u32 2147483647, %v713
        %vm716 = vcmp.ne.f32.partialorder %v714, %v714
        %vm717 = vcmp.ne.f32.partialorder %v715, %v715
        %vm718 = vmxor %vm716, 1
        %vm719 = vmxor %vm717, 1
        %v720 = vsel %vm718, 1, 0
        %v721 = vsel %vm719, 1, 0
        %v722 = vrot.slane %v721, 7
        %v723 = vsel %vm485, %v720, %v722
        %vm724 = vcmp.ne.s32.totalorder %v723, 0
        %vm725 = vmand %vm671, %vm724
        %v726 = vld [vmem:[%s358] sm:$0x3]
        %v729 = vrot.slane %v715, 7
        %v730 = vsel %vm485, %v714, %v729
        %v732 = vsel %vm725, %v730, 0.0
        %v733 = vadd.f32 %v726, %v732
        %v734 = vlaneseq
        %vm735 = vcmp.ge.s32.totalorder %v734, 0
        %vm736 = vcmp.lt.s32.totalorder %v734, 256
        %vm737 = vmand %vm735, %vm736
        %738 = vst.msk [vmem:[%s358] sm:$0x3] %vm737, %v733
        %v739 = vld [vmem:[%s365] sm:$0x3]
        %v740 = vsel %vm725, 1, 0
        %v741 = vcvt.s32.f32 %v740
        %v742 = vadd.f32 %v739, %v741
        %743 = vst.msk [vmem:[%s365] sm:$0x3] %vm737, %v742
        %s744 = sand.u32 %s176, 1
        %s745 = scalar_lea.sflag [#allocation6], %s744
        %s746 = sand.u32 %s176, 1
        %s747 = smul.addr %s746, 2
        %s748 = scalar_lea.vmem [#allocation7], %s747
        %s749 = sand.u32 %s204, 1
        %s750 = scalar_lea.sflag [#allocation9], %s749
        %s751 = sand.u32 %s204, 1
        %s752 = smul.addr %s751, 2
        %s753 = scalar_lea.vmem [#allocation8], %s752
        // Predicated region
        $region45: #{tpu_custom_call.1} parent=35 // pred_check
          %p754 = pneg %p186
        $region46: #{tpu_custom_call.1} parent=35 // pred_check_branch
          %756 = sbr.rel (%p754) target = $region48
        $region47: #{tpu_custom_call.1} parent=35 // pred_region
          %758 = vsyncadd %s745, 0
          %s759 = smul.addr %s41, 2
          %s760 = smul.addr %s40, 4
          %s761 = sadd.s32 %s759, %s760
          %s762 = scalar_lea.hbm %s5, %s761
          %s764 = sshll.u32 %s748, 4
          %s765 = int_to_ptr.vmem [resolvable:$true] %s764
          %s766 = sshll.u32 %s762, 4
          %s767 = int_to_ptr.hbm [resolvable:$true] %s766
          %769 = dma.vmem_to_hbm [thread:$0]  %s765, 32, %s767, %s745
        $region48: #{tpu_custom_call.1} parent=35 // pred_fallthru
          _
        // Predicated region
        $region49: #{tpu_custom_call.1} parent=35 // pred_check
          %p770 = pneg %p214
        $region50: #{tpu_custom_call.1} parent=35 // pred_check_branch
          %772 = sbr.rel (%p770) target = $region52
        $region51: #{tpu_custom_call.1} parent=35 // pred_region
          %774 = vsyncadd %s750, 0
          %s775 = smul.addr %s41, 2
          %s776 = smul.addr %s40, 4
          %s777 = sadd.s32 %s775, %s776
          %s778 = scalar_lea.hbm %s6, %s777
          %s780 = sshll.u32 %s753, 4
          %s781 = int_to_ptr.vmem [resolvable:$true] %s780
          %s782 = sshll.u32 %s778, 4
          %s783 = int_to_ptr.hbm [resolvable:$true] %s782
          %785 = dma.vmem_to_hbm [thread:$0]  %s781, 32, %s783, %s750
        $region52: #{tpu_custom_call.1} parent=35 // pred_fallthru
          _
      $region36: #{tpu_custom_call.1} parent=5 // pred_fallthru
        _
      %p786 = scmp.le.s32.totalorder 2, %s30
      // Predicated region
      $region53: #{tpu_custom_call.1} parent=5 // pred_check
        %p787 = pneg %p786
      $region54: #{tpu_custom_call.1} parent=5 // pred_check_branch
        %789 = sbr.rel (%p787) target = $region56
      $region55: #{tpu_custom_call.1} parent=5 // pred_region
        %s790 = ssub.s32 %s30, 2
        // Predicated region
        $region57: #{tpu_custom_call.1} parent=55 // pred_check
          %p791 = pneg %p192
        $region58: #{tpu_custom_call.1} parent=55 // pred_check_branch
          %793 = sbr.rel (%p791) target = $region60
        $region59: #{tpu_custom_call.1} parent=55 // pred_region
          %s794 = sand.u32 %s177, 1
          %s795 = scalar_lea.sflag [#allocation6], %s794
          %s796 = sand.u32 %s177, 1
          %s797 = smul.addr %s796, 2
          %s798 = scalar_lea.vmem [#allocation7], %s797
          %800 = dma.done %s795, 32
        $region60: #{tpu_custom_call.1} parent=55 // pred_fallthru
          _
        // Predicated region
        $region61: #{tpu_custom_call.1} parent=55 // pred_check
          %p801 = pneg %p220
        $region62: #{tpu_custom_call.1} parent=55 // pred_check_branch
          %803 = sbr.rel (%p801) target = $region64
        $region63: #{tpu_custom_call.1} parent=55 // pred_region
          %s804 = sand.u32 %s205, 1
          %s805 = scalar_lea.sflag [#allocation9], %s804
          %s806 = sand.u32 %s205, 1
          %s807 = smul.addr %s806, 2
          %s808 = scalar_lea.vmem [#allocation8], %s807
          %810 = dma.done %s805, 32
        $region64: #{tpu_custom_call.1} parent=55 // pred_fallthru
          _
      $region56: #{tpu_custom_call.1} parent=5 // pred_fallthru
        _
    $region6: #{tpu_custom_call.1} parent=1 // loop_footer
      %s34 = sadd.s32 1, %s30
    $region7: #{tpu_custom_call.1} parent=1 // loop_footer_branch
      %29 = sbr.rel target = $region3
    $region8: #{tpu_custom_call.1} parent=1 // loop_exit
      _
    %811 = vsyncpa [#allocation5], 1
    %s812 = scalar_lea.sflag [#allocation5], 1
    %813 = vsyncpa %s812, 1
    %814 = vsyncpa [#allocation6], 1
    %s815 = scalar_lea.sflag [#allocation6], 1
    %816 = vsyncpa %s815, 1
    %817 = vsyncpa [#allocation9], 1
    %s818 = scalar_lea.sflag [#allocation9], 1
    %819 = vsyncpa %s818, 1

</llo_original>
